<compile_context>
chip_gen: v7x
topology: tpu7x:2x2x1
jax: 0.10.0
libtpu: 0.0.40
codegen_flags: <defaults>
</compile_context>

<pallas_src>
import functools

import jax
import jax.numpy as jnp
import numpy as np
from jax.experimental import pallas as pl
from jax.experimental.pallas import tpu as pltpu


def _tgp_kernel(x_ref, w_ref, b_ref, mln_ref, wg_ref, bg_ref, out_ref,
                *, filter_size, eps):
    Bb, L, D = x_ref.shape
    F = filter_size

    # Flatten the batch block into the sublane dim so the fused projection
    # matmul feeds the MXU a (Bb*L, D) LHS instead of per-batch slivers.
    x = x_ref[...].reshape(Bb * L, D)

    # One fused projection: [ timewise_linear(f_linear(x)) | v_linear(x) ].
    proj = jnp.dot(x, w_ref[...], preferred_element_type=jnp.float32) + b_ref[...]
    f = proj[:, :F]                                   # (Bb*L, F)
    v = proj[:, F:]                                   # (Bb*L, P)

    # Vectorised per-head LayerNorm statistics: block-averaging matmul
    # broadcasts each head's mean / variance across its own Fh lanes (MXU,
    # not XLU).  gamma/beta are folded into the gate weights on the host.
    mean = jnp.dot(f, mln_ref[...], preferred_element_type=jnp.float32)
    centered = f - mean
    var = jnp.dot(centered * centered, mln_ref[...],
                  preferred_element_type=jnp.float32)
    f_scaled = centered * jax.lax.rsqrt(var + eps)    # (Bb*L, F)

    # Fused [gamma*LN -> g_linear -> head->lane expansion] in one matmul,
    # then a single sigmoid over the P-lane gate slab.
    gate_full = jax.nn.sigmoid(
        jnp.dot(f_scaled, wg_ref[...], preferred_element_type=jnp.float32)
        + bg_ref[...])                                # (Bb*L, P)

    # Gated sum over the sequence dim; single lane-dense store.
    pooled = jnp.sum((v * gate_full).reshape(Bb, L, v.shape[-1]), axis=1)
    out_ref[...] = pooled.astype(out_ref.dtype)


def temporal_gate_pooling(x, params, num_head, eps=1e-5, block_b=None):
    """x: (B, L, D) float32 -> (B, P) float32."""
    B, L, D = x.shape
    F = params['wf'].shape[1]
    P = params['wv'].shape[1]
    assert F % num_head == 0 and P % num_head == 0
    Fh, Ph = F // num_head, P // num_head

    if block_b is None:
        block_b = B          # whole batch per grid step at small B
    assert B % block_b == 0

    f32 = jnp.float32
    eye_h = jnp.eye(num_head, dtype=f32)

    # --- one-off host-side (traced) folding of the shared per-head linears ---
    # timewise_linear folded into f_linear (block-diagonal over heads).
    wt_bd = jnp.kron(eye_h, params['wt'].astype(f32))                       # (F, F)
    wf_folded = params['wf'].astype(f32) @ wt_bd                            # (D, F)
    bf_folded = (params['bf'].astype(f32) @ wt_bd
                 + jnp.tile(params['bt'].astype(f32), (1, num_head)))       # (1, F)
    w_all = jnp.concatenate([wf_folded, params['wv'].astype(f32)], axis=1)  # (D, F+P)
    b_all = jnp.concatenate([bf_folded, params['bv'].astype(f32)], axis=1)  # (1, F+P)
    # Per-head mean/var broadcasting matrix for LayerNorm.
    m_ln = jnp.kron(eye_h, jnp.full((Fh, Fh), 1.0 / Fh, f32))               # (F, F)
    # gamma/beta + g_linear + head->lane expansion folded into one (F, P) map.
    gamma_full = jnp.tile(params['gamma'].astype(f32), (1, num_head))       # (1, F)
    beta_full = jnp.tile(params['beta'].astype(f32), (1, num_head))         # (1, F)
    wg_bd = jnp.kron(eye_h, params['wg'].astype(f32))                       # (F, H)
    expand = jnp.kron(eye_h, jnp.ones((1, Ph), f32))                        # (H, P)
    wgate_full = (gamma_full.T * wg_bd) @ expand                            # (F, P)
    bgate_full = (beta_full @ wg_bd
                  + params['bg'].astype(f32)) @ expand                      # (1, P)

    kernel = functools.partial(_tgp_kernel, filter_size=F, eps=eps)

    def full_spec(shape):
        nd = len(shape)
        return pl.BlockSpec(shape, lambda b, _nd=nd: (0,) * _nd)

    out = pl.pallas_call(
        kernel,
        out_shape=jax.ShapeDtypeStruct((B, P), jnp.float32),
        grid=(B // block_b,),
        in_specs=[
            pl.BlockSpec((block_b, L, D), lambda b: (b, 0, 0)),  # hidden_states
            full_spec((D, F + P)),     # fused projection weight
            full_spec((1, F + P)),     # fused projection bias
            full_spec((F, F)),         # per-head block-averaging matrix (LN)
            full_spec((F, P)),         # fused gamma*gate*expand weight
            full_spec((1, P)),         # fused gate bias (beta + bg, expanded)
        ],
        out_specs=pl.BlockSpec((block_b, P), lambda b: (b, 0)),
        compiler_params=pltpu.CompilerParams(dimension_semantics=("parallel",)),
    )(x, w_all, b_all, m_ln, wgate_full, bgate_full)
    return out


def reference(x, params, num_head, eps=1e-5):
    """Pure-JAX reference mirroring the PyTorch forward exactly."""
    B, L, D = x.shape
    F = params['wf'].shape[1]
    P = params['wv'].shape[1]
    Fh, Ph = F // num_head, P // num_head
    f = x @ params['wf'] + params['bf'][0]                       # (B, L, F)
    v = x @ params['wv'] + params['bv'][0]                       # (B, L, P)
    f = f.reshape(B, L, num_head, Fh).transpose(0, 2, 1, 3)      # (B, H, L, Fh)
    v = v.reshape(B, L, num_head, Ph).transpose(0, 2, 1, 3)      # (B, H, L, Ph)
    f = f @ params['wt'] + params['bt'][0]
    mean = f.mean(-1, keepdims=True)
    var = ((f - mean) ** 2).mean(-1, keepdims=True)
    f = (f - mean) / jnp.sqrt(var + eps) * params['gamma'][0] + params['beta'][0]
    g = jax.nn.sigmoid(f @ params['wg'] + params['bg'][0])       # (B, H, L, 1)
    out = jnp.sum(v * g, axis=-2)                                # (B, H, Ph)
    return out.reshape(B, -1)


if __name__ == "__main__":
    # Config: hidden_size=32, filter_size=32, pooling_hidden_size=32, heads=4
    B, L, D = 2, 16, 32
    H, F, P = 4, 32, 32
    Fh = F // H

    key = jax.random.PRNGKey(0)
    ks = jax.random.split(key, 8)

    def xavier(k, shape):
        bound = (6.0 / (shape[0] + shape[1])) ** 0.5
        return jax.random.uniform(k, shape, jnp.float32, -bound, bound)

    # Deterministic parameter init (matches the module's init shapes;
    # xavier_uniform_ for f/v weights, ones for timewise bias, LN gamma=1, beta=0).
    params = dict(
        wf=xavier(ks[0], (D, F)),
        bf=jax.random.uniform(ks[1], (1, F), jnp.float32, -0.1, 0.1),
        wv=xavier(ks[2], (D, P)),
        bv=jax.random.uniform(ks[3], (1, P), jnp.float32, -0.1, 0.1),
        wt=xavier(ks[4], (Fh, Fh)),
        bt=jnp.ones((1, Fh), jnp.float32),
        gamma=jnp.ones((1, Fh), jnp.float32),
        beta=jnp.zeros((1, Fh), jnp.float32),
        wg=xavier(ks[5], (Fh, 1)),
        bg=jnp.zeros((1, 1), jnp.float32),
    )

    x = jax.random.normal(ks[6], (B, L, D), jnp.float32)

    out = jax.block_until_ready(temporal_gate_pooling(x, params, H))
    ref = reference(x, params, H)
    np.testing.assert_allclose(np.asarray(out), np.asarray(ref), rtol=1e-4, atol=1e-5)
    assert out.shape == (B, P)
    print("KERNEL_OK")
</pallas_src>

<mosaic_0001>
module attributes {stable_mosaic.version = 11 : i64} {
  func.func @_tgp_kernel(%arg0: i32, %arg1: memref<2x16x32xf32, #tpu.memory_space<vmem>>, %arg2: memref<32x64xf32, #tpu.memory_space<vmem>>, %arg3: memref<1x64xf32, #tpu.memory_space<vmem>>, %arg4: memref<32x32xf32, #tpu.memory_space<vmem>>, %arg5: memref<32x32xf32, #tpu.memory_space<vmem>>, %arg6: memref<1x32xf32, #tpu.memory_space<vmem>>, %arg7: memref<2x32xf32, #tpu.memory_space<vmem>>) attributes {dimension_semantics = [#tpu.dimension_semantics<parallel>], iteration_bounds = array<i64: 1>, scalar_prefetch = 0 : i64, scratch_operands = 0 : i64, tpu.core_type = #tpu.core_type<tc>, window_params = [{transform_indices = @transform_0, window_bounds = array<i64: 2, 16, 32>}, {pipeline_mode = #tpu.pipeline_mode<synchronous>, transform_indices = @transform_1, window_bounds = array<i64: 32, 64>}, {pipeline_mode = #tpu.pipeline_mode<synchronous>, transform_indices = @transform_2, window_bounds = array<i64: 1, 64>}, {pipeline_mode = #tpu.pipeline_mode<synchronous>, transform_indices = @transform_3, window_bounds = array<i64: 32, 32>}, {pipeline_mode = #tpu.pipeline_mode<synchronous>, transform_indices = @transform_4, window_bounds = array<i64: 32, 32>}, {pipeline_mode = #tpu.pipeline_mode<synchronous>, transform_indices = @transform_5, window_bounds = array<i64: 1, 32>}, {transform_indices = @transform_6, window_bounds = array<i64: 2, 32>}]} {
    %c0 = arith.constant 0 : index
    %c0_0 = arith.constant 0 : index
    %c0_1 = arith.constant 0 : index
    %0 = vector.load %arg1[%c0, %c0_0, %c0_1] : memref<2x16x32xf32, #tpu.memory_space<vmem>>, vector<2x16x32xf32>
    %1 = vector.shape_cast %0 : vector<2x16x32xf32> to vector<32x32xf32>
    %c0_2 = arith.constant 0 : index
    %c0_3 = arith.constant 0 : index
    %2 = vector.load %arg2[%c0_2, %c0_3] : memref<32x64xf32, #tpu.memory_space<vmem>>, vector<32x64xf32>
    %cst = arith.constant dense<0.000000e+00> : vector<32x64xf32>
    %3 = tpu.matmul %1, %2, %cst {dimension_numbers = #tpu.dot_dimension_numbers<[1], [0], [0], [1], [0, 0, 1, 1], [], []>} : vector<32x32xf32>, vector<32x64xf32>, vector<32x64xf32> -> vector<32x64xf32>
    %c0_4 = arith.constant 0 : index
    %c0_5 = arith.constant 0 : index
    %4 = vector.load %arg3[%c0_4, %c0_5] : memref<1x64xf32, #tpu.memory_space<vmem>>, vector<1x64xf32>
    %5 = vector.broadcast %4 : vector<1x64xf32> to vector<32x64xf32>
    %6 = arith.addf %3, %5 : vector<32x64xf32>
    %7 = vector.extract_strided_slice %6 {offsets = [0, 0], sizes = [32, 32], strides = [1, 1]} : vector<32x64xf32> to vector<32x32xf32>
    %8 = vector.extract_strided_slice %6 {offsets = [0, 32], sizes = [32, 32], strides = [1, 1]} : vector<32x64xf32> to vector<32x32xf32>
    %c0_6 = arith.constant 0 : index
    %c0_7 = arith.constant 0 : index
    %9 = vector.load %arg4[%c0_6, %c0_7] : memref<32x32xf32, #tpu.memory_space<vmem>>, vector<32x32xf32>
    %cst_8 = arith.constant dense<0.000000e+00> : vector<32x32xf32>
    %10 = tpu.matmul %7, %9, %cst_8 {dimension_numbers = #tpu.dot_dimension_numbers<[1], [0], [0], [1], [0, 0, 1, 1], [], []>} : vector<32x32xf32>, vector<32x32xf32>, vector<32x32xf32> -> vector<32x32xf32>
    %11 = arith.subf %7, %10 : vector<32x32xf32>
    %12 = arith.mulf %11, %11 : vector<32x32xf32>
    %c0_9 = arith.constant 0 : index
    %c0_10 = arith.constant 0 : index
    %13 = vector.load %arg4[%c0_9, %c0_10] : memref<32x32xf32, #tpu.memory_space<vmem>>, vector<32x32xf32>
    %cst_11 = arith.constant dense<0.000000e+00> : vector<32x32xf32>
    %14 = tpu.matmul %12, %13, %cst_11 {dimension_numbers = #tpu.dot_dimension_numbers<[1], [0], [0], [1], [0, 0, 1, 1], [], []>} : vector<32x32xf32>, vector<32x32xf32>, vector<32x32xf32> -> vector<32x32xf32>
    %cst_12 = arith.constant 9.99999974E-6 : f32
    %15 = vector.broadcast %cst_12 : f32 to vector<32x32xf32>
    %16 = arith.addf %14, %15 : vector<32x32xf32>
    %17 = math.rsqrt %16 : vector<32x32xf32>
    %18 = arith.mulf %11, %17 : vector<32x32xf32>
    %c0_13 = arith.constant 0 : index
    %c0_14 = arith.constant 0 : index
    %19 = vector.load %arg5[%c0_13, %c0_14] : memref<32x32xf32, #tpu.memory_space<vmem>>, vector<32x32xf32>
    %cst_15 = arith.constant dense<0.000000e+00> : vector<32x32xf32>
    %20 = tpu.matmul %18, %19, %cst_15 {dimension_numbers = #tpu.dot_dimension_numbers<[1], [0], [0], [1], [0, 0, 1, 1], [], []>} : vector<32x32xf32>, vector<32x32xf32>, vector<32x32xf32> -> vector<32x32xf32>
    %c0_16 = arith.constant 0 : index
    %c0_17 = arith.constant 0 : index
    %21 = vector.load %arg6[%c0_16, %c0_17] : memref<1x32xf32, #tpu.memory_space<vmem>>, vector<1x32xf32>
    %22 = vector.broadcast %21 : vector<1x32xf32> to vector<32x32xf32>
    %23 = arith.addf %20, %22 : vector<32x32xf32>
    %24 = arith.negf %23 : vector<32x32xf32>
    %25 = math.exp %24 : vector<32x32xf32>
    %cst_18 = arith.constant 1.000000e+00 : f32
    %26 = vector.broadcast %cst_18 : f32 to vector<32x32xf32>
    %27 = arith.addf %26, %25 : vector<32x32xf32>
    %28 = arith.divf %26, %27 : vector<32x32xf32>
    %29 = arith.mulf %8, %28 : vector<32x32xf32>
    %30 = vector.shape_cast %29 : vector<32x32xf32> to vector<2x16x32xf32>
    %cst_19 = arith.constant dense<0.000000e+00> : vector<2x32xf32>
    %31 = vector.multi_reduction <add>, %30, %cst_19 [1] : vector<2x16x32xf32> to vector<2x32xf32>
    %c0_20 = arith.constant 0 : index
    %c0_21 = arith.constant 0 : index
    %32 = vector.load %arg7[%c0_20, %c0_21] : memref<2x32xf32, #tpu.memory_space<vmem>>, vector<2x32xf32>
    tpu.vector_store %arg7[%c0_20, %c0_21], %31 {strides = array<i32>} : memref<2x32xf32, #tpu.memory_space<vmem>>, vector<2x32xf32>,
    return
  }
  func.func @transform_0(%arg0: i32) -> (i32, i32, i32) {
    %c0_i32 = arith.constant 0 : i32
    %c0_i32_0 = arith.constant 0 : i32
    %c0_i32_1 = arith.constant 0 : i32
    return %arg0, %c0_i32, %c0_i32_0 : i32, i32, i32
  }
  func.func @transform_1(%arg0: i32) -> (i32, i32) {
    %c0_i32 = arith.constant 0 : i32
    %c0_i32_0 = arith.constant 0 : i32
    %c0_i32_1 = arith.constant 0 : i32
    return %c0_i32, %c0_i32_0 : i32, i32
  }
  func.func @transform_2(%arg0: i32) -> (i32, i32) {
    %c0_i32 = arith.constant 0 : i32
    %c0_i32_0 = arith.constant 0 : i32
    %c0_i32_1 = arith.constant 0 : i32
    return %c0_i32, %c0_i32_0 : i32, i32
  }
  func.func @transform_3(%arg0: i32) -> (i32, i32) {
    %c0_i32 = arith.constant 0 : i32
    %c0_i32_0 = arith.constant 0 : i32
    %c0_i32_1 = arith.constant 0 : i32
    return %c0_i32, %c0_i32_0 : i32, i32
  }
  func.func @transform_4(%arg0: i32) -> (i32, i32) {
    %c0_i32 = arith.constant 0 : i32
    %c0_i32_0 = arith.constant 0 : i32
    %c0_i32_1 = arith.constant 0 : i32
    return %c0_i32, %c0_i32_0 : i32, i32
  }
  func.func @transform_5(%arg0: i32) -> (i32, i32) {
    %c0_i32 = arith.constant 0 : i32
    %c0_i32_0 = arith.constant 0 : i32
    %c0_i32_1 = arith.constant 0 : i32
    return %c0_i32, %c0_i32_0 : i32, i32
  }
  func.func @transform_6(%arg0: i32) -> (i32, i32) {
    %c0_i32 = arith.constant 0 : i32
    %c0_i32_0 = arith.constant 0 : i32
    return %arg0, %c0_i32 : i32, i32
  }
}

</mosaic_0001>

<llo_original>
// kernel: tpu_custom_call.1
$region0: #{tpu_custom_call.1}
  #allocation0 [shape = 'u32[]', space=smem, size = 0x4, offset = 0x4, fixed_abs, tag = 'smem constant byte address 0x4 - core index']
  #allocation1 [shape = 'u32[144,128]{1,0:T(1,128)}', space=vmem, size = 0x12000, scoped, tag = 'internal scratch']
  %s0 = inlined_call_operand.hbm [shape: f32[2,16,32], index: 0, kind: input, shape index: {}]
  %s1 = inlined_call_operand.hbm [shape: f32[32,64], index: 1, kind: input, shape index: {}]
  %s2 = inlined_call_operand.vmem [shape: f32[1,64], index: 2, kind: input, shape index: {}]
  %s3 = inlined_call_operand.hbm [shape: f32[32,32], index: 3, kind: input, shape index: {}]
  %s4 = inlined_call_operand.hbm [shape: f32[32,32], index: 4, kind: input, shape index: {}]
  %s5 = inlined_call_operand.vmem [shape: f32[1,32], index: 5, kind: input, shape index: {}]
  %s6 = inlined_call_operand.hbm [shape: f32[2,32], index: 6, kind: output, shape index: {}]
  %s7 = sld [smem:[#allocation0]]
  $region50: #{tpu_custom_call.1} parent=0
    _
  %s9 = ssub.s32 1, %s7
  %s10 = scalar_select 0, %s9, %s7
  $region1: #{tpu_custom_call.1} parent=0
    #allocation2 [shape = 'u8[16384]{0}', space=vmem, size = 0x4000, scoped, tag = 'input window, operand 0, single buffered']
    #allocation3 [shape = 's32[1]{0}', space=sflag, size = 0x4, scoped, tag = 'scoped memory for tpu_custom_call.1']
    #allocation4 [shape = 's32[1]{0}', space=sflag, size = 0x4, scoped, tag = 'scoped memory for tpu_custom_call.1']
    #allocation5 [shape = 'u8[16384]{0}', space=vmem, size = 0x4000, scoped, tag = 'input window, operand 1, single buffered']
    #allocation6 [shape = 's32[1]{0}', space=sflag, size = 0x4, scoped, tag = 'scoped memory for tpu_custom_call.1']
    #allocation7 [shape = 'u8[16384]{0}', space=vmem, size = 0x4000, scoped, tag = 'input window, operand 3, single buffered']
    #allocation8 [shape = 'u8[16384]{0}', space=vmem, size = 0x4000, scoped, tag = 'input window, operand 4, single buffered']
    #allocation9 [shape = 's32[1]{0}', space=sflag, size = 0x4, scoped, tag = 'scoped memory for tpu_custom_call.1']
    #allocation10 [shape = 'u8[1024]{0}', space=vmem, size = 0x400, scoped, tag = 'output window, operand 0, single buffered']
    %11 = vsyncpa [#allocation3], 0
    %12 = vsyncpa [#allocation6], 0
    %13 = vsyncpa [#allocation9], 0
    %14 = vsyncpa [#allocation4], 0
    // Predicated region
    $region2: #{tpu_custom_call.1} parent=1 // pred_check
      _
    $region3: #{tpu_custom_call.1} parent=1 // pred_check_branch
      %16 = sbr.rel (0) target = $region5
    $region4: #{tpu_custom_call.1} parent=1 // pred_region
      %s18 = ssub.s32 512, 512
      %19 = vsyncadd [#allocation3], %s18
      %s20 = sshll.u32 [#allocation2], 4
      %s21 = int_to_ptr.vmem [resolvable:$true] %s20
      %26 = dma.hbm_to_vmem [thread:$0]  %s0, 512, %s21, [#allocation3], 128, 128, 8
    $region5: #{tpu_custom_call.1} parent=1 // pred_fallthru
      _
    // Predicated region
    $region6: #{tpu_custom_call.1} parent=1 // pred_check
      _
    $region7: #{tpu_custom_call.1} parent=1 // pred_check_branch
      %28 = sbr.rel (0) target = $region9
    $region8: #{tpu_custom_call.1} parent=1 // pred_region
      %s30 = ssub.s32 512, 512
      %31 = vsyncadd [#allocation6], %s30
      %s32 = sshll.u32 [#allocation5], 4
      %s33 = int_to_ptr.vmem [resolvable:$true] %s32
      %38 = dma.hbm_to_vmem [thread:$0]  %s1, 512, %s33, [#allocation6], 128, 128, 8
    $region9: #{tpu_custom_call.1} parent=1 // pred_fallthru
      _
    // Predicated region
    $region10: #{tpu_custom_call.1} parent=1 // pred_check
      _
    $region11: #{tpu_custom_call.1} parent=1 // pred_check_branch
      %40 = sbr.rel (0) target = $region13
    $region12: #{tpu_custom_call.1} parent=1 // pred_region
      _
    $region13: #{tpu_custom_call.1} parent=1 // pred_fallthru
      _
    // Predicated region
    $region14: #{tpu_custom_call.1} parent=1 // pred_check
      _
    $region15: #{tpu_custom_call.1} parent=1 // pred_check_branch
      %42 = sbr.rel (0) target = $region17
    $region16: #{tpu_custom_call.1} parent=1 // pred_region
      %s44 = ssub.s32 512, 512
      %45 = vsyncadd [#allocation6], %s44
      %s46 = sshll.u32 [#allocation7], 4
      %s47 = int_to_ptr.vmem [resolvable:$true] %s46
      %52 = dma.hbm_to_vmem [thread:$0]  %s3, 512, %s47, [#allocation6], 128, 128, 8
    $region17: #{tpu_custom_call.1} parent=1 // pred_fallthru
      _
    // Predicated region
    $region18: #{tpu_custom_call.1} parent=1 // pred_check
      _
    $region19: #{tpu_custom_call.1} parent=1 // pred_check_branch
      %54 = sbr.rel (0) target = $region21
    $region20: #{tpu_custom_call.1} parent=1 // pred_region
      %s56 = ssub.s32 512, 512
      %57 = vsyncadd [#allocation9], %s56
      %s58 = sshll.u32 [#allocation8], 4
      %s59 = int_to_ptr.vmem [resolvable:$true] %s58
      %64 = dma.hbm_to_vmem [thread:$0]  %s4, 512, %s59, [#allocation9], 128, 128, 8
    $region21: #{tpu_custom_call.1} parent=1 // pred_fallthru
      _
    // Predicated region
    $region22: #{tpu_custom_call.1} parent=1 // pred_check
      _
    $region23: #{tpu_custom_call.1} parent=1 // pred_check_branch
      %66 = sbr.rel (0) target = $region25
    $region24: #{tpu_custom_call.1} parent=1 // pred_region
      _
    $region25: #{tpu_custom_call.1} parent=1 // pred_fallthru
      _
    // Predicated region
    $region26: #{tpu_custom_call.1} parent=1 // pred_check
      _
    $region27: #{tpu_custom_call.1} parent=1 // pred_check_branch
      %68 = sbr.rel (0) target = $region29
    $region28: #{tpu_custom_call.1} parent=1 // pred_region
      %69 = dma.done [#allocation3], 512
    $region29: #{tpu_custom_call.1} parent=1 // pred_fallthru
      _
    // Predicated region
    $region30: #{tpu_custom_call.1} parent=1 // pred_check
      _
    $region31: #{tpu_custom_call.1} parent=1 // pred_check_branch
      %71 = sbr.rel (0) target = $region33
    $region32: #{tpu_custom_call.1} parent=1 // pred_region
      %72 = dma.done [#allocation6], 512
    $region33: #{tpu_custom_call.1} parent=1 // pred_fallthru
      _
    // Predicated region
    $region34: #{tpu_custom_call.1} parent=1 // pred_check
      _
    $region35: #{tpu_custom_call.1} parent=1 // pred_check_branch
      %74 = sbr.rel (0) target = $region37
    $region36: #{tpu_custom_call.1} parent=1 // pred_region
      %75 = dma.done [#allocation6], 512
    $region37: #{tpu_custom_call.1} parent=1 // pred_fallthru
      _
    // Predicated region
    $region38: #{tpu_custom_call.1} parent=1 // pred_check
      _
    $region39: #{tpu_custom_call.1} parent=1 // pred_check_branch
      %77 = sbr.rel (0) target = $region41
    $region40: #{tpu_custom_call.1} parent=1 // pred_region
      %78 = dma.done [#allocation9], 512
    $region41: #{tpu_custom_call.1} parent=1 // pred_fallthru
      _
    %v79 = vld [vmem:[#allocation2] sm:$0xff]
    %v80 = vld [vmem:[#allocation2 + $0x8] sm:$0xff]
    %v81 = vld [vmem:[#allocation2 + $0x10] sm:$0xff]
    %v82 = vld [vmem:[#allocation2 + $0x18] sm:$0xff]
    %v83 = vld [vmem:[#allocation5] sm:$0xff]
    %v84 = vld [vmem:[#allocation5 + $0x8] sm:$0xff]
    %v85 = vld [vmem:[#allocation5 + $0x10] sm:$0xff]
    %v86 = vld [vmem:[#allocation5 + $0x18] sm:$0xff]
    %v87 = vld [vmem:[%s2] sm:$0x1]
    %v89 = vlaneseq
    %v90 = vshrl.u32 %v89, 7
    %v91 = vsub.s32 0, %v90
    %v92 = vrot.slane %v87, %v91
    %vm94 = vcmask 261120
    %v96 = vsel %vm94, %v79, 0
    %v99 = vsel %vm94, %v80, 0
    %v102 = vsel %vm94, %v81, 0
    %v105 = vsel %vm94, %v82, 0
    %107 = vmatprep.subr.mxu0 0.0
    %108 = vmatpush1.msra.mxu0 %v83
    %109 = vmatprep.subr.mxu0 0.0
    %110 = vmatpush1.msra.mxu0 %v84
    %111 = vmatprep.subr.mxu0 0.0
    %112 = vmatpush1.msra.mxu0 %v85
    %113 = vmatprep.subr.mxu0 0.0
    %114 = vmatpush1.msra.mxu0 %v86
    %115 = vmatprep.subr.mxu0 0.0
    %116 = vmatpush1.msra.mxu0 0.0
    %117 = vmatprep.subr.mxu0 0.0
    %118 = vmatpush1.msra.mxu0 0.0
    %119 = vmatprep.subr.mxu0 0.0
    %120 = vmatpush1.msra.mxu0 0.0
    %121 = vmatprep.subr.mxu0 0.0
    %122 = vmatpush1.msra.mxu0 0.0
    %123 = vmatprep.subr.mxu0 0.0
    %124 = vmatpush1.msra.mxu0 0.0
    %125 = vmatprep.subr.mxu0 0.0
    %126 = vmatpush1.msra.mxu0 0.0
    %127 = vmatprep.subr.mxu0 0.0
    %128 = vmatpush1.msra.mxu0 0.0
    %129 = vmatprep.subr.mxu0 0.0
    %130 = vmatpush1.msra.mxu0 0.0
    %131 = vmatprep.subr.mxu0 0.0
    %132 = vmatpush1.msra.mxu0 0.0
    %133 = vmatprep.subr.mxu0 0.0
    %134 = vmatpush1.msra.mxu0 0.0
    %135 = vmatprep.subr.mxu0 0.0
    %136 = vmatpush1.msra.mxu0 0.0
    %137 = vmatprep.subr.mxu0 0.0
    %138 = vmatpush1.msra.mxu0 0.0
    %139 = vmatprep.subr.mxu0 0.0
    %140 = vmatpush1.msra.mxu0 0.0
    %141 = vmatprep.subr.mxu0 0.0
    %142 = vmatpush1.msra.mxu0 0.0
    %143 = vmatprep.subr.mxu0 0.0
    %144 = vmatpush1.msra.mxu0 0.0
    %145 = vmatprep.subr.mxu0 0.0
    %146 = vmatpush1.msra.mxu0 0.0
    %147 = vmatprep.subr.mxu0 0.0
    %148 = vmatpush1.msra.mxu0 0.0
    %149 = vmatprep.subr.mxu0 0.0
    %150 = vmatpush1.msra.mxu0 0.0
    %151 = vmatprep.subr.mxu0 0.0
    %152 = vmatpush1.msra.mxu0 0.0
    %153 = vmatprep.subr.mxu0 0.0
    %154 = vmatpush1.msra.mxu0 0.0
    %155 = vmatprep.subr.mxu0 0.0
    %156 = vmatpush1.msra.mxu0 0.0
    %157 = vmatprep.subr.mxu0 0.0
    %158 = vmatpush1.msra.mxu0 0.0
    %159 = vmatprep.subr.mxu0 0.0
    %160 = vmatpush1.msra.mxu0 0.0
    %161 = vmatprep.subr.mxu0 0.0
    %162 = vmatpush1.msra.mxu0 0.0
    %163 = vmatprep.subr.mxu0 0.0
    %164 = vmatpush1.msra.mxu0 0.0
    %165 = vmatprep.subr.mxu0 0.0
    %166 = vmatpush1.msra.mxu0 0.0
    %167 = vmatprep.subr.mxu0 0.0
    %168 = vmatpush1.msra.mxu0 0.0
    %169 = vmatprep.subr.mxu0 0.0
    %170 = vmatpush1.msra.mxu0 0.0
    %171 = vmatprep.mubr.f32.mxu0 0.0
    %172 = vmatmul.mubr.f32.gmra.mrb[0].mxu0 %v96
    %v173 = vpop.f32.mrb[0].mxu0
    %v174 = vadd.f32 %v92, %v173
    %v175 = vpop.f32.mrb[0].mxu0
    %176 = vmatprep.mubr.f32.mxu0 0.0
    %177 = vmatmul.mubr.f32.gmra.mrb[0].mxu0 %v99
    %v178 = vpop.f32.mrb[0].mxu0
    %v179 = vadd.f32 %v92, %v178
    %v180 = vpop.f32.mrb[0].mxu0
    %181 = vmatprep.mubr.f32.mxu0 0.0
    %182 = vmatmul.mubr.f32.gmra.mrb[0].mxu0 %v102
    %v183 = vpop.f32.mrb[0].mxu0
    %v184 = vadd.f32 %v92, %v183
    %v185 = vpop.f32.mrb[0].mxu0
    %186 = vmatprep.mubr.f32.mxu0 0.0
    %187 = vmatmul.mubr.f32.gmra.mrb[0].mxu0 %v105
    %v188 = vpop.f32.mrb[0].mxu0
    %v189 = vadd.f32 %v92, %v188
    %v190 = vpop.f32.mrb[0].mxu0
    %191 = vdwg.mxu0
    %v192 = vld [vmem:[#allocation7] sm:$0xff]
    %v193 = vld [vmem:[#allocation7 + $0x8] sm:$0xff]
    %v194 = vld [vmem:[#allocation7 + $0x10] sm:$0xff]
    %v195 = vld [vmem:[#allocation7 + $0x18] sm:$0xff]
    %v197 = vsel %vm94, %v174, 0
    %v200 = vsel %vm94, %v179, 0
    %v203 = vsel %vm94, %v184, 0
    %v206 = vsel %vm94, %v189, 0
    %208 = vmatprep.subr.mxu0 0.0
    %209 = vmatpush1.msra.mxu0 %v192
    %210 = vmatprep.subr.mxu0 0.0
    %211 = vmatpush1.msra.mxu0 %v193
    %212 = vmatprep.subr.mxu0 0.0
    %213 = vmatpush1.msra.mxu0 %v194
    %214 = vmatprep.subr.mxu0 0.0
    %215 = vmatpush1.msra.mxu0 %v195
    %216 = vmatprep.subr.mxu0 0.0
    %217 = vmatpush1.msra.mxu0 0.0
    %218 = vmatprep.subr.mxu0 0.0
    %219 = vmatpush1.msra.mxu0 0.0
    %220 = vmatprep.subr.mxu0 0.0
    %221 = vmatpush1.msra.mxu0 0.0
    %222 = vmatprep.subr.mxu0 0.0
    %223 = vmatpush1.msra.mxu0 0.0
    %224 = vmatprep.subr.mxu0 0.0
    %225 = vmatpush1.msra.mxu0 0.0
    %226 = vmatprep.subr.mxu0 0.0
    %227 = vmatpush1.msra.mxu0 0.0
    %228 = vmatprep.subr.mxu0 0.0
    %229 = vmatpush1.msra.mxu0 0.0
    %230 = vmatprep.subr.mxu0 0.0
    %231 = vmatpush1.msra.mxu0 0.0
    %232 = vmatprep.subr.mxu0 0.0
    %233 = vmatpush1.msra.mxu0 0.0
    %234 = vmatprep.subr.mxu0 0.0
    %235 = vmatpush1.msra.mxu0 0.0
    %236 = vmatprep.subr.mxu0 0.0
    %237 = vmatpush1.msra.mxu0 0.0
    %238 = vmatprep.subr.mxu0 0.0
    %239 = vmatpush1.msra.mxu0 0.0
    %240 = vmatprep.subr.mxu0 0.0
    %241 = vmatpush1.msra.mxu0 0.0
    %242 = vmatprep.subr.mxu0 0.0
    %243 = vmatpush1.msra.mxu0 0.0
    %244 = vmatprep.subr.mxu0 0.0
    %245 = vmatpush1.msra.mxu0 0.0
    %246 = vmatprep.subr.mxu0 0.0
    %247 = vmatpush1.msra.mxu0 0.0
    %248 = vmatprep.subr.mxu0 0.0
    %249 = vmatpush1.msra.mxu0 0.0
    %250 = vmatprep.subr.mxu0 0.0
    %251 = vmatpush1.msra.mxu0 0.0
    %252 = vmatprep.subr.mxu0 0.0
    %253 = vmatpush1.msra.mxu0 0.0
    %254 = vmatprep.subr.mxu0 0.0
    %255 = vmatpush1.msra.mxu0 0.0
    %256 = vmatprep.subr.mxu0 0.0
    %257 = vmatpush1.msra.mxu0 0.0
    %258 = vmatprep.subr.mxu0 0.0
    %259 = vmatpush1.msra.mxu0 0.0
    %260 = vmatprep.subr.mxu0 0.0
    %261 = vmatpush1.msra.mxu0 0.0
    %262 = vmatprep.subr.mxu0 0.0
    %263 = vmatpush1.msra.mxu0 0.0
    %264 = vmatprep.subr.mxu0 0.0
    %265 = vmatpush1.msra.mxu0 0.0
    %266 = vmatprep.subr.mxu0 0.0
    %267 = vmatpush1.msra.mxu0 0.0
    %268 = vmatprep.subr.mxu0 0.0
    %269 = vmatpush1.msra.mxu0 0.0
    %270 = vmatprep.subr.mxu0 0.0
    %271 = vmatpush1.msra.mxu0 0.0
    %272 = vmatprep.mubr.f32.mxu0 0.0
    %273 = vmatmul.mubr.f32.gmra.mrb[0].mxu0 %v197
    %v274 = vpop.f32.mrb[0].mxu0
    %v275 = vadd.f32 0.0, %v274
    %v276 = vpop.f32.mrb[0].mxu0
    %277 = vmatprep.mubr.f32.mxu0 0.0
    %278 = vmatmul.mubr.f32.gmra.mrb[0].mxu0 %v200
    %v279 = vpop.f32.mrb[0].mxu0
    %v280 = vadd.f32 0.0, %v279
    %v281 = vpop.f32.mrb[0].mxu0
    %282 = vmatprep.mubr.f32.mxu0 0.0
    %283 = vmatmul.mubr.f32.gmra.mrb[0].mxu0 %v203
    %v284 = vpop.f32.mrb[0].mxu0
    %v285 = vadd.f32 0.0, %v284
    %v286 = vpop.f32.mrb[0].mxu0
    %287 = vmatprep.mubr.f32.mxu0 0.0
    %288 = vmatmul.mubr.f32.gmra.mrb[0].mxu0 %v206
    %v289 = vpop.f32.mrb[0].mxu0
    %v290 = vadd.f32 0.0, %v289
    %v291 = vpop.f32.mrb[0].mxu0
    %292 = vdwg.mxu0
    %v293 = vsub.f32 %v174, %v275
    %v294 = vsub.f32 %v179, %v280
    %v295 = vsub.f32 %v184, %v285
    %v296 = vsub.f32 %v189, %v290
    %v297 = vmul.f32 %v293, %v293
    %v298 = vmul.f32 %v294, %v294
    %v299 = vmul.f32 %v295, %v295
    %v300 = vmul.f32 %v296, %v296
    %v302 = vsel %vm94, %v297, 0
    %v305 = vsel %vm94, %v298, 0
    %v308 = vsel %vm94, %v299, 0
    %v311 = vsel %vm94, %v300, 0
    %313 = vmatprep.subr.mxu0 0.0
    %314 = vmatpush1.msra.mxu0 %v192
    %315 = vmatprep.subr.mxu0 0.0
    %316 = vmatpush1.msra.mxu0 %v193
    %317 = vmatprep.subr.mxu0 0.0
    %318 = vmatpush1.msra.mxu0 %v194
    %319 = vmatprep.subr.mxu0 0.0
    %320 = vmatpush1.msra.mxu0 %v195
    %321 = vmatprep.subr.mxu0 0.0
    %322 = vmatpush1.msra.mxu0 0.0
    %323 = vmatprep.subr.mxu0 0.0
    %324 = vmatpush1.msra.mxu0 0.0
    %325 = vmatprep.subr.mxu0 0.0
    %326 = vmatpush1.msra.mxu0 0.0
    %327 = vmatprep.subr.mxu0 0.0
    %328 = vmatpush1.msra.mxu0 0.0
    %329 = vmatprep.subr.mxu0 0.0
    %330 = vmatpush1.msra.mxu0 0.0
    %331 = vmatprep.subr.mxu0 0.0
    %332 = vmatpush1.msra.mxu0 0.0
    %333 = vmatprep.subr.mxu0 0.0
    %334 = vmatpush1.msra.mxu0 0.0
    %335 = vmatprep.subr.mxu0 0.0
    %336 = vmatpush1.msra.mxu0 0.0
    %337 = vmatprep.subr.mxu0 0.0
    %338 = vmatpush1.msra.mxu0 0.0
    %339 = vmatprep.subr.mxu0 0.0
    %340 = vmatpush1.msra.mxu0 0.0
    %341 = vmatprep.subr.mxu0 0.0
    %342 = vmatpush1.msra.mxu0 0.0
    %343 = vmatprep.subr.mxu0 0.0
    %344 = vmatpush1.msra.mxu0 0.0
    %345 = vmatprep.subr.mxu0 0.0
    %346 = vmatpush1.msra.mxu0 0.0
    %347 = vmatprep.subr.mxu0 0.0
    %348 = vmatpush1.msra.mxu0 0.0
    %349 = vmatprep.subr.mxu0 0.0
    %350 = vmatpush1.msra.mxu0 0.0
    %351 = vmatprep.subr.mxu0 0.0
    %352 = vmatpush1.msra.mxu0 0.0
    %353 = vmatprep.subr.mxu0 0.0
    %354 = vmatpush1.msra.mxu0 0.0
    %355 = vmatprep.subr.mxu0 0.0
    %356 = vmatpush1.msra.mxu0 0.0
    %357 = vmatprep.subr.mxu0 0.0
    %358 = vmatpush1.msra.mxu0 0.0
    %359 = vmatprep.subr.mxu0 0.0
    %360 = vmatpush1.msra.mxu0 0.0
    %361 = vmatprep.subr.mxu0 0.0
    %362 = vmatpush1.msra.mxu0 0.0
    %363 = vmatprep.subr.mxu0 0.0
    %364 = vmatpush1.msra.mxu0 0.0
    %365 = vmatprep.subr.mxu0 0.0
    %366 = vmatpush1.msra.mxu0 0.0
    %367 = vmatprep.subr.mxu0 0.0
    %368 = vmatpush1.msra.mxu0 0.0
    %369 = vmatprep.subr.mxu0 0.0
    %370 = vmatpush1.msra.mxu0 0.0
    %371 = vmatprep.subr.mxu0 0.0
    %372 = vmatpush1.msra.mxu0 0.0
    %373 = vmatprep.subr.mxu0 0.0
    %374 = vmatpush1.msra.mxu0 0.0
    %375 = vmatprep.subr.mxu0 0.0
    %376 = vmatpush1.msra.mxu0 0.0
    %377 = vmatprep.mubr.f32.mxu0 0.0
    %378 = vmatmul.mubr.f32.gmra.mrb[0].mxu0 %v302
    %v379 = vpop.f32.mrb[0].mxu0
    %v380 = vadd.f32 1e-05, %v379
    %v381 = vpop.f32.mrb[0].mxu0
    %382 = vmatprep.mubr.f32.mxu0 0.0
    %383 = vmatmul.mubr.f32.gmra.mrb[0].mxu0 %v305
    %v384 = vpop.f32.mrb[0].mxu0
    %v385 = vadd.f32 1e-05, %v384
    %v386 = vpop.f32.mrb[0].mxu0
    %387 = vmatprep.mubr.f32.mxu0 0.0
    %388 = vmatmul.mubr.f32.gmra.mrb[0].mxu0 %v308
    %v389 = vpop.f32.mrb[0].mxu0
    %v390 = vadd.f32 1e-05, %v389
    %v391 = vpop.f32.mrb[0].mxu0
    %392 = vmatprep.mubr.f32.mxu0 0.0
    %393 = vmatmul.mubr.f32.gmra.mrb[0].mxu0 %v311
    %v394 = vpop.f32.mrb[0].mxu0
    %v395 = vadd.f32 1e-05, %v394
    %v396 = vpop.f32.mrb[0].mxu0
    %397 = vdwg.mxu0
    %v398 = vrsqrt.pop %v380
    %v399 = vrsqrt.pop %v385
    %v400 = vrsqrt.pop %v390
    %v401 = vrsqrt.pop %v395
    %v402 = vmul.f32 %v293, %v398
    %v403 = vmul.f32 %v294, %v399
    %v404 = vmul.f32 %v295, %v400
    %v405 = vmul.f32 %v296, %v401
    %v406 = vld [vmem:[#allocation8] sm:$0xff]
    %v407 = vld [vmem:[#allocation8 + $0x8] sm:$0xff]
    %v408 = vld [vmem:[#allocation8 + $0x10] sm:$0xff]
    %v409 = vld [vmem:[#allocation8 + $0x18] sm:$0xff]
    %v410 = vld [vmem:[%s5] sm:$0x1]
    %v412 = vlaneseq
    %v413 = vshrl.u32 %v412, 7
    %v414 = vsub.s32 0, %v413
    %v415 = vrot.slane %v410, %v414
    %v418 = vsel %vm94, %v402, 0
    %v421 = vsel %vm94, %v403, 0
    %v424 = vsel %vm94, %v404, 0
    %v427 = vsel %vm94, %v405, 0
    %429 = vmatprep.subr.mxu0 0.0
    %430 = vmatpush1.msra.mxu0 %v406
    %431 = vmatprep.subr.mxu0 0.0
    %432 = vmatpush1.msra.mxu0 %v407
    %433 = vmatprep.subr.mxu0 0.0
    %434 = vmatpush1.msra.mxu0 %v408
    %435 = vmatprep.subr.mxu0 0.0
    %436 = vmatpush1.msra.mxu0 %v409
    %437 = vmatprep.subr.mxu0 0.0
    %438 = vmatpush1.msra.mxu0 0.0
    %439 = vmatprep.subr.mxu0 0.0
    %440 = vmatpush1.msra.mxu0 0.0
    %441 = vmatprep.subr.mxu0 0.0
    %442 = vmatpush1.msra.mxu0 0.0
    %443 = vmatprep.subr.mxu0 0.0
    %444 = vmatpush1.msra.mxu0 0.0
    %445 = vmatprep.subr.mxu0 0.0
    %446 = vmatpush1.msra.mxu0 0.0
    %447 = vmatprep.subr.mxu0 0.0
    %448 = vmatpush1.msra.mxu0 0.0
    %449 = vmatprep.subr.mxu0 0.0
    %450 = vmatpush1.msra.mxu0 0.0
    %451 = vmatprep.subr.mxu0 0.0
    %452 = vmatpush1.msra.mxu0 0.0
    %453 = vmatprep.subr.mxu0 0.0
    %454 = vmatpush1.msra.mxu0 0.0
    %455 = vmatprep.subr.mxu0 0.0
    %456 = vmatpush1.msra.mxu0 0.0
    %457 = vmatprep.subr.mxu0 0.0
    %458 = vmatpush1.msra.mxu0 0.0
    %459 = vmatprep.subr.mxu0 0.0
    %460 = vmatpush1.msra.mxu0 0.0
    %461 = vmatprep.subr.mxu0 0.0
    %462 = vmatpush1.msra.mxu0 0.0
    %463 = vmatprep.subr.mxu0 0.0
    %464 = vmatpush1.msra.mxu0 0.0
    %465 = vmatprep.subr.mxu0 0.0
    %466 = vmatpush1.msra.mxu0 0.0
    %467 = vmatprep.subr.mxu0 0.0
    %468 = vmatpush1.msra.mxu0 0.0
    %469 = vmatprep.subr.mxu0 0.0
    %470 = vmatpush1.msra.mxu0 0.0
    %471 = vmatprep.subr.mxu0 0.0
    %472 = vmatpush1.msra.mxu0 0.0
    %473 = vmatprep.subr.mxu0 0.0
    %474 = vmatpush1.msra.mxu0 0.0
    %475 = vmatprep.subr.mxu0 0.0
    %476 = vmatpush1.msra.mxu0 0.0
    %477 = vmatprep.subr.mxu0 0.0
    %478 = vmatpush1.msra.mxu0 0.0
    %479 = vmatprep.subr.mxu0 0.0
    %480 = vmatpush1.msra.mxu0 0.0
    %481 = vmatprep.subr.mxu0 0.0
    %482 = vmatpush1.msra.mxu0 0.0
    %483 = vmatprep.subr.mxu0 0.0
    %484 = vmatpush1.msra.mxu0 0.0
    %485 = vmatprep.subr.mxu0 0.0
    %486 = vmatpush1.msra.mxu0 0.0
    %487 = vmatprep.subr.mxu0 0.0
    %488 = vmatpush1.msra.mxu0 0.0
    %489 = vmatprep.subr.mxu0 0.0
    %490 = vmatpush1.msra.mxu0 0.0
    %491 = vmatprep.subr.mxu0 0.0
    %492 = vmatpush1.msra.mxu0 0.0
    %493 = vmatprep.mubr.f32.mxu0 0.0
    %494 = vmatmul.mubr.f32.gmra.mrb[0].mxu0 %v418
    %v495 = vpop.f32.mrb[0].mxu0
    %v496 = vadd.f32 %v415, %v495
    %v497 = vpop.f32.mrb[0].mxu0
    %498 = vmatprep.mubr.f32.mxu0 0.0
    %499 = vmatmul.mubr.f32.gmra.mrb[0].mxu0 %v421
    %v500 = vpop.f32.mrb[0].mxu0
    %v501 = vadd.f32 %v415, %v500
    %v502 = vpop.f32.mrb[0].mxu0
    %503 = vmatprep.mubr.f32.mxu0 0.0
    %504 = vmatmul.mubr.f32.gmra.mrb[0].mxu0 %v424
    %v505 = vpop.f32.mrb[0].mxu0
    %v506 = vadd.f32 %v415, %v505
    %v507 = vpop.f32.mrb[0].mxu0
    %508 = vmatprep.mubr.f32.mxu0 0.0
    %509 = vmatmul.mubr.f32.gmra.mrb[0].mxu0 %v427
    %v510 = vpop.f32.mrb[0].mxu0
    %v511 = vadd.f32 %v415, %v510
    %v512 = vpop.f32.mrb[0].mxu0
    %513 = vdwg.mxu0
    %v514 = vxor.u32 %v496, 2147483648
    %v515 = vxor.u32 %v501, 2147483648
    %v516 = vxor.u32 %v506, 2147483648
    %v517 = vxor.u32 %v511, 2147483648
    %v518 = vmul.f32 %v514, 1.442695
    %v519 = vpow.pop %v518
    %v520 = vmul.f32 %v515, 1.442695
    %v521 = vpow.pop %v520
    %v522 = vmul.f32 %v516, 1.442695
    %v523 = vpow.pop %v522
    %v524 = vmul.f32 %v517, 1.442695
    %v525 = vpow.pop %v524
    %v526 = vadd.f32 %v519, 1.0
    %v527 = vadd.f32 %v521, 1.0
    %v528 = vadd.f32 %v523, 1.0
    %v529 = vadd.f32 %v525, 1.0
    %v530 = vrcp.pop %v526
    %v531 = vmul.f32 1.0, %v530
    %v532 = vrcp.pop %v527
    %v533 = vmul.f32 1.0, %v532
    %v534 = vrcp.pop %v528
    %v535 = vmul.f32 1.0, %v534
    %v536 = vrcp.pop %v529
    %v537 = vmul.f32 1.0, %v536
    %542 = vrot.lane.b32.xlu0 %v531, 32
    %v543 = vpop.permute.xlu0 %542
    %544 = vrot.lane.b32.xlu0 %v533, 32
    %v545 = vpop.permute.xlu0 %544
    %546 = vrot.lane.b32.xlu0 %v535, 32
    %v547 = vpop.permute.xlu0 %546
    %548 = vrot.lane.b32.xlu0 %v537, 32
    %v549 = vpop.permute.xlu0 %548
    %v554 = vmul.f32 %v174, %v543
    %v555 = vmul.f32 %v179, %v545
    %v556 = vmul.f32 %v184, %v547
    %v557 = vmul.f32 %v189, %v549
    %vm558 = vcmask 523520
    %v559 = vsel %vm558, %v554, 0.0
    %v560 = vsel %vm558, %v555, 0.0
    %v561 = vadd.f32 %v559, %v560
    %v562 = vrot.slane %v561, 4
    %v563 = vadd.f32 %v561, %v562
    %v564 = vrot.slane %v563, 2
    %v565 = vadd.f32 %v563, %v564
    %v566 = vrot.slane %v565, 1
    %v567 = vadd.f32 %v565, %v566
    %v568 = vsel %vm558, %v556, 0.0
    %v569 = vsel %vm558, %v557, 0.0
    %v570 = vadd.f32 %v568, %v569
    %v571 = vrot.slane %v570, 4
    %v572 = vadd.f32 %v570, %v571
    %v573 = vrot.slane %v572, 2
    %v574 = vadd.f32 %v572, %v573
    %v575 = vrot.slane %v574, 1
    %v576 = vadd.f32 %v574, %v575
    %vm579 = vcmask 1041409
    %v580 = vsel %vm579, %v576, %v567
    %581 = vrot.lane.b32.xlu0 %v580, 96
    %v582 = vpop.permute.xlu0 %581
    %vm584 = vcmask 254976
    %585 = vst.msk [vmem:[#allocation10] sm:$0x3] %vm584, %v582
    // Predicated region
    $region42: #{tpu_custom_call.1} parent=1 // pred_check
      _
    $region43: #{tpu_custom_call.1} parent=1 // pred_check_branch
      %587 = sbr.rel (0) target = $region45
    $region44: #{tpu_custom_call.1} parent=1 // pred_region
      %s589 = ssub.s32 32, 32
      %590 = vsyncadd [#allocation4], %s589
      %s592 = sshll.u32 [#allocation10], 4
      %s593 = int_to_ptr.vmem [resolvable:$true] %s592
      %595 = dma.vmem_to_hbm [thread:$0]  %s593, 32, %s6, [#allocation4]
    $region45: #{tpu_custom_call.1} parent=1 // pred_fallthru
      _
    // Predicated region
    $region46: #{tpu_custom_call.1} parent=1 // pred_check
      _
    $region47: #{tpu_custom_call.1} parent=1 // pred_check_branch
      %597 = sbr.rel (0) target = $region49
    $region48: #{tpu_custom_call.1} parent=1 // pred_region
      %598 = dma.done [#allocation4], 32
    $region49: #{tpu_custom_call.1} parent=1 // pred_fallthru
      _
    %599 = vsyncpa [#allocation3], 1
    %600 = vsyncpa [#allocation6], 1
    %601 = vsyncpa [#allocation9], 1
    %602 = vsyncpa [#allocation4], 1

</llo_original>
